<compile_context>
chip_gen: v5e
topology: v5e:2x2
jax: 0.10.0
libtpu: 0.0.40
codegen_flags: <defaults>
</compile_context>

<pallas_src>
import jax
import jax.numpy as jnp
from jax.experimental import pallas as pl
from jax.experimental.pallas import tpu as pltpu

NUM_INPUT_FEATURES = 4


def _voxel_mean_kernel(feat_ref, cnt_ref, sel_ref, exp_ref, out_ref):
    # feat_ref: (tile, group*P*C_in)   packed voxel features (lane-dense)
    # cnt_ref : (tile, group)          int32 point counts, one per voxel
    # sel_ref : (group*P*C_in, out_w)  constant 0/1 selector (resident)
    # exp_ref : (group, out_w)         constant 0/1 channel expander (resident)
    # out_ref : (tile, out_w)          out_w = group*C  (128 for C=4)
    sums = jnp.dot(feat_ref[...], sel_ref[...],
                   preferred_element_type=jnp.float32)          # MXU point-sum
    cnt_e = jnp.dot(cnt_ref[...].astype(jnp.float32), exp_ref[...],
                    preferred_element_type=jnp.float32)         # per-lane counts
    out_ref[...] = (sums / cnt_e).astype(out_ref.dtype)          # same op order as torch


def simple_voxel_forward(features, num_voxels, *,
                         num_input_features=NUM_INPUT_FEATURES,
                         tile_rows=1024):
    """features: [N, P, C_in] float, num_voxels: [N] int -> [N, num_input_features]."""
    n, p, c_in = features.shape
    c = num_input_features
    assert c_in >= c, "features have fewer channels than num_input_features"
    out_dtype = features.dtype

    # ---- lane-dense grouping: pack `group` voxels per row so the OUTPUT row is
    # (close to) 128 lanes wide; keep out_w <= 128 (full MXU width on v5e too).
    group = max(1, 128 // c)
    out_w = group * c                      # 128 for c=4
    row_elems = p * c_in                   # elems per voxel in the input
    packed_w = group * row_elems           # 1024 for p=8, c_in=4

    # ---- pad only to a `group` multiple (no whole-tile padding; zero copies
    # in the aligned case).  Padded counts = 1 so no spurious inf, and padded
    # outputs are sliced off below.
    n_group = -(-n // group) * group
    feats_flat = features.reshape(n, row_elems)          # contiguous, free
    counts = num_voxels.astype(jnp.int32)
    if n_group != n:
        feats_flat = jnp.pad(feats_flat, ((0, n_group - n), (0, 0)))
        counts = jnp.pad(counts, (0, n_group - n), constant_values=1)
    rows = n_group // group
    feats_packed = feats_flat.reshape(rows, packed_w)     # contiguous, free
    counts_packed = counts.reshape(rows, group)

    # ---- constant 0/1 selector: sums the first `c` channels of each packed voxel.
    kk = jnp.arange(packed_w)
    jj = jnp.arange(out_w)
    sel = (((kk[:, None] // row_elems) == (jj[None, :] // c))
           & ((kk[:, None] % c_in) == (jj[None, :] % c))).astype(out_dtype)
    # channel expander: broadcasts one count per voxel across its c output lanes.
    gg = jnp.arange(group)
    exp = ((jj[None, :] // c) == gg[:, None]).astype(jnp.float32)

    # ---- tile choice: multiple of 8 sublanes (or the full leading dim for tiny
    # N); aim for >= 2 grid steps so both v7x TensorCores get work.  Ragged
    # last block is handled by Pallas (masked writes).
    tile_rows = max(8, (int(tile_rows) // 8) * 8)
    if rows < 16:
        tile = rows                        # single block == full leading dim
    else:
        half = max(8, (((rows + 1) // 2) // 8) * 8)
        tile = min(tile_rows, half)
    grid = (pl.cdiv(rows, tile),)

    itemsize = jnp.dtype(out_dtype).itemsize
    bytes_accessed = (rows * packed_w * itemsize          # features in
                      + rows * group * 4                  # int32 counts in
                      + packed_w * out_w * itemsize       # selector (fetched once)
                      + group * out_w * 4                 # expander (fetched once)
                      + rows * out_w * itemsize)          # output
    cost = pl.CostEstimate(
        flops=2 * rows * out_w * (packed_w + group) + rows * out_w,
        transcendentals=0,
        bytes_accessed=int(bytes_accessed))

    out_packed = pl.pallas_call(
        _voxel_mean_kernel,
        out_shape=jax.ShapeDtypeStruct((rows, out_w), out_dtype),
        grid_spec=pltpu.PrefetchScalarGridSpec(
            num_scalar_prefetch=0,
            grid=grid,
            in_specs=[
                pl.BlockSpec((tile, packed_w), lambda i: (i, 0)),
                pl.BlockSpec((tile, group), lambda i: (i, 0)),
                pl.BlockSpec((packed_w, out_w), lambda i: (0, 0)),  # resident constant
                pl.BlockSpec((group, out_w), lambda i: (0, 0)),     # resident constant
            ],
            out_specs=pl.BlockSpec((tile, out_w), lambda i: (i, 0)),
        ),
        compiler_params=pltpu.CompilerParams(
            dimension_semantics=("parallel",),          # megacore-shard row tiles
            vmem_limit_bytes=48 * 1024 * 1024,          # > v5e's 16 MiB default, < v7x physical
        ),
        cost_estimate=cost,
    )(feats_packed, counts_packed, sel, exp)

    # Unpack [rows, group*C] -> [N, C]; contiguous reshape, slice only if padded.
    out = out_packed.reshape(n_group, c)
    if n_group != n:
        out = out[:n]
    return out


if __name__ == "__main__":
    key = jax.random.PRNGKey(0)
    k_feat, k_cnt = jax.random.split(key)

    N_VOXELS = 64      # concated_num_points (number of voxels)
    MAX_POINTS = 8     # num_voxel_size (points per voxel)
    C = 4              # per-point feature dim (x, y, z, r)

    features = jax.random.normal(k_feat, (N_VOXELS, MAX_POINTS, C), dtype=jnp.float32)
    num_voxels = jax.random.randint(k_cnt, (N_VOXELS,), 1, MAX_POINTS + 1, dtype=jnp.int32)

    out = simple_voxel_forward(features, num_voxels)
    out = jax.block_until_ready(out)

    # reference check (pure JAX, mirrors the PyTorch module)
    ref = (features[:, :, :NUM_INPUT_FEATURES].sum(axis=1)
           / num_voxels.astype(jnp.float32).reshape(-1, 1))
    assert out.shape == (N_VOXELS, NUM_INPUT_FEATURES)
    assert jnp.allclose(out, ref, atol=1e-5, rtol=1e-5), \
        float(jnp.max(jnp.abs(out - ref)))

    print("KERNEL_OK")
</pallas_src>

<mosaic_0001>
module attributes {stable_mosaic.version = 11 : i64} {
  func.func @_voxel_mean_kernel(%arg0: i32, %arg1: memref<2x1024xf32, #tpu.memory_space<vmem>>, %arg2: memref<2x32xi32, #tpu.memory_space<vmem>>, %arg3: memref<1024x128xf32, #tpu.memory_space<vmem>>, %arg4: memref<32x128xf32, #tpu.memory_space<vmem>>, %arg5: memref<2x128xf32, #tpu.memory_space<vmem>>) attributes {dimension_semantics = [#tpu.dimension_semantics<parallel>], iteration_bounds = array<i64: 1>, scalar_prefetch = 0 : i64, scratch_operands = 0 : i64, tpu.core_type = #tpu.core_type<tc>, window_params = [{transform_indices = @transform_0, window_bounds = array<i64: 2, 1024>}, {transform_indices = @transform_1, window_bounds = array<i64: 2, 32>}, {pipeline_mode = #tpu.pipeline_mode<synchronous>, transform_indices = @transform_2, window_bounds = array<i64: 1024, 128>}, {pipeline_mode = #tpu.pipeline_mode<synchronous>, transform_indices = @transform_3, window_bounds = array<i64: 32, 128>}, {transform_indices = @transform_4, window_bounds = array<i64: 2, 128>}]} {
    %c0 = arith.constant 0 : index
    %c0_0 = arith.constant 0 : index
    %0 = vector.load %arg1[%c0, %c0_0] : memref<2x1024xf32, #tpu.memory_space<vmem>>, vector<2x1024xf32>
    %c0_1 = arith.constant 0 : index
    %c0_2 = arith.constant 0 : index
    %1 = vector.load %arg3[%c0_1, %c0_2] : memref<1024x128xf32, #tpu.memory_space<vmem>>, vector<1024x128xf32>
    %cst = arith.constant dense<0.000000e+00> : vector<2x128xf32>
    %2 = tpu.matmul %0, %1, %cst {dimension_numbers = #tpu.dot_dimension_numbers<[1], [0], [0], [1], [0, 0, 1, 1], [], []>} : vector<2x1024xf32>, vector<1024x128xf32>, vector<2x128xf32> -> vector<2x128xf32>
    %c0_3 = arith.constant 0 : index
    %c0_4 = arith.constant 0 : index
    %3 = vector.load %arg2[%c0_3, %c0_4] : memref<2x32xi32, #tpu.memory_space<vmem>>, vector<2x32xi32>
    %4 = arith.sitofp %3 : vector<2x32xi32> to vector<2x32xf32>
    %c0_5 = arith.constant 0 : index
    %c0_6 = arith.constant 0 : index
    %5 = vector.load %arg4[%c0_5, %c0_6] : memref<32x128xf32, #tpu.memory_space<vmem>>, vector<32x128xf32>
    %cst_7 = arith.constant dense<0.000000e+00> : vector<2x128xf32>
    %6 = tpu.matmul %4, %5, %cst_7 {dimension_numbers = #tpu.dot_dimension_numbers<[1], [0], [0], [1], [0, 0, 1, 1], [], []>} : vector<2x32xf32>, vector<32x128xf32>, vector<2x128xf32> -> vector<2x128xf32>
    %7 = arith.divf %2, %6 : vector<2x128xf32>
    %c0_8 = arith.constant 0 : index
    %c0_9 = arith.constant 0 : index
    %8 = vector.load %arg5[%c0_8, %c0_9] : memref<2x128xf32, #tpu.memory_space<vmem>>, vector<2x128xf32>
    tpu.vector_store %arg5[%c0_8, %c0_9], %7 {strides = array<i32>} : memref<2x128xf32, #tpu.memory_space<vmem>>, vector<2x128xf32>,
    return
  }
  func.func @transform_0(%arg0: i32) -> (i32, i32) {
    %c0_i32 = arith.constant 0 : i32
    %c0_i32_0 = arith.constant 0 : i32
    return %arg0, %c0_i32 : i32, i32
  }
  func.func @transform_1(%arg0: i32) -> (i32, i32) {
    %c0_i32 = arith.constant 0 : i32
    %c0_i32_0 = arith.constant 0 : i32
    return %arg0, %c0_i32 : i32, i32
  }
  func.func @transform_2(%arg0: i32) -> (i32, i32) {
    %c0_i32 = arith.constant 0 : i32
    %c0_i32_0 = arith.constant 0 : i32
    %c0_i32_1 = arith.constant 0 : i32
    return %c0_i32, %c0_i32_0 : i32, i32
  }
  func.func @transform_3(%arg0: i32) -> (i32, i32) {
    %c0_i32 = arith.constant 0 : i32
    %c0_i32_0 = arith.constant 0 : i32
    %c0_i32_1 = arith.constant 0 : i32
    return %c0_i32, %c0_i32_0 : i32, i32
  }
  func.func @transform_4(%arg0: i32) -> (i32, i32) {
    %c0_i32 = arith.constant 0 : i32
    %c0_i32_0 = arith.constant 0 : i32
    return %arg0, %c0_i32 : i32, i32
  }
}

</mosaic_0001>

<llo_original>
// kernel: tpu_custom_call.1
$region0: #{tpu_custom_call.1}
  #allocation0 [shape = 'u32[]', space=smem, size = 0x4, offset = 0x4, fixed_abs, tag = 'smem constant byte address 0x4 - core index']
  #allocation1 [shape = 'u32[72,128]{1,0:T(1,128)}', space=vmem, size = 0x9000, scoped, tag = 'internal scratch']
  %s0 = inlined_call_operand.hbm [shape: f32[2,1024], index: 0, kind: input, shape index: {}]
  %s1 = inlined_call_operand.hbm [shape: s32[2,32], index: 1, kind: input, shape index: {}]
  %s2 = inlined_call_operand.hbm [shape: f32[1024,128], index: 2, kind: input, shape index: {}]
  %s3 = inlined_call_operand.hbm [shape: f32[32,128], index: 3, kind: input, shape index: {}]
  %s4 = inlined_call_operand.hbm [shape: f32[2,128], index: 4, kind: output, shape index: {}]
  %s5 = sld [smem:[#allocation0]]
  $region42: #{tpu_custom_call.1} parent=0
    _
  %s7 = ssub.s32 1, %s5
  %s8 = scalar_select 0, %s7, %s5
  $region1: #{tpu_custom_call.1} parent=0
    #allocation2 [shape = 'u8[8192]{0}', space=vmem, size = 0x2000, scoped, tag = 'input window, operand 0, single buffered']
    #allocation3 [shape = 's32[1]{0}', space=sflag, size = 0x4, scoped, tag = 'scoped memory for tpu_custom_call.1']
    #allocation4 [shape = 's32[1]{0}', space=sflag, size = 0x4, scoped, tag = 'scoped memory for tpu_custom_call.1']
    #allocation5 [shape = 'u8[1024]{0}', space=vmem, size = 0x400, scoped, tag = 'input window, operand 1, single buffered']
    #allocation6 [shape = 's32[1]{0}', space=sflag, size = 0x4, scoped, tag = 'scoped memory for tpu_custom_call.1']
    #allocation7 [shape = 'u8[524288]{0}', space=vmem, size = 0x80000, scoped, tag = 'input window, operand 2, single buffered']
    #allocation8 [shape = 'u8[16384]{0}', space=vmem, size = 0x4000, scoped, tag = 'input window, operand 3, single buffered']
    #allocation9 [shape = 's32[1]{0}', space=sflag, size = 0x4, scoped, tag = 'scoped memory for tpu_custom_call.1']
    #allocation10 [shape = 'u8[1024]{0}', space=vmem, size = 0x400, scoped, tag = 'output window, operand 0, single buffered']
    %9 = vsyncpa [#allocation3], 0
    %10 = vsyncpa [#allocation6], 0
    %11 = vsyncpa [#allocation9], 0
    %12 = vsyncpa [#allocation4], 0
    // Predicated region
    $region2: #{tpu_custom_call.1} parent=1 // pred_check
      _
    $region3: #{tpu_custom_call.1} parent=1 // pred_check_branch
      %14 = sbr.rel (0) target = $region5
    $region4: #{tpu_custom_call.1} parent=1 // pred_region
      %16 = vsyncadd [#allocation3], 0
      %s18 = sshll.u32 %s0, 4
      %s19 = int_to_ptr.hbm [resolvable:$true] %s18
      %s20 = sshll.u32 [#allocation2], 4
      %s21 = int_to_ptr.vmem [resolvable:$true] %s20
      %23 = dma.hbm_to_vmem [thread:$0]  %s19, 256, %s21, [#allocation3]
    $region5: #{tpu_custom_call.1} parent=1 // pred_fallthru
      _
    // Predicated region
    $region6: #{tpu_custom_call.1} parent=1 // pred_check
      _
    $region7: #{tpu_custom_call.1} parent=1 // pred_check_branch
      %25 = sbr.rel (0) target = $region9
    $region8: #{tpu_custom_call.1} parent=1 // pred_region
      %27 = vsyncadd [#allocation6], 0
      %s29 = sshll.u32 %s1, 4
      %s30 = int_to_ptr.hbm [resolvable:$true] %s29
      %s31 = sshll.u32 [#allocation5], 4
      %s32 = int_to_ptr.vmem [resolvable:$true] %s31
      %34 = dma.hbm_to_vmem [thread:$0]  %s30, 32, %s32, [#allocation6]
    $region9: #{tpu_custom_call.1} parent=1 // pred_fallthru
      _
    // Predicated region
    $region10: #{tpu_custom_call.1} parent=1 // pred_check
      _
    $region11: #{tpu_custom_call.1} parent=1 // pred_check_branch
      %36 = sbr.rel (0) target = $region13
    $region12: #{tpu_custom_call.1} parent=1 // pred_region
      %38 = vsyncadd [#allocation6], 0
      %s39 = sshll.u32 %s2, 4
      %s40 = int_to_ptr.hbm [resolvable:$true] %s39
      %s41 = sshll.u32 [#allocation7], 4
      %s42 = int_to_ptr.vmem [resolvable:$true] %s41
      %47 = dma.hbm_to_vmem [thread:$0]  %s40, 16384, %s42, [#allocation6], 128, 128, 8
    $region13: #{tpu_custom_call.1} parent=1 // pred_fallthru
      _
    // Predicated region
    $region14: #{tpu_custom_call.1} parent=1 // pred_check
      _
    $region15: #{tpu_custom_call.1} parent=1 // pred_check_branch
      %49 = sbr.rel (0) target = $region17
    $region16: #{tpu_custom_call.1} parent=1 // pred_region
      %51 = vsyncadd [#allocation9], 0
      %s52 = sshll.u32 %s3, 4
      %s53 = int_to_ptr.hbm [resolvable:$true] %s52
      %s54 = sshll.u32 [#allocation8], 4
      %s55 = int_to_ptr.vmem [resolvable:$true] %s54
      %60 = dma.hbm_to_vmem [thread:$0]  %s53, 512, %s55, [#allocation9], 128, 128, 8
    $region17: #{tpu_custom_call.1} parent=1 // pred_fallthru
      _
    // Predicated region
    $region18: #{tpu_custom_call.1} parent=1 // pred_check
      _
    $region19: #{tpu_custom_call.1} parent=1 // pred_check_branch
      %62 = sbr.rel (0) target = $region21
    $region20: #{tpu_custom_call.1} parent=1 // pred_region
      %64 = dma.done [#allocation3], 256
    $region21: #{tpu_custom_call.1} parent=1 // pred_fallthru
      _
    // Predicated region
    $region22: #{tpu_custom_call.1} parent=1 // pred_check
      _
    $region23: #{tpu_custom_call.1} parent=1 // pred_check_branch
      %66 = sbr.rel (0) target = $region25
    $region24: #{tpu_custom_call.1} parent=1 // pred_region
      %68 = dma.done [#allocation6], 32
    $region25: #{tpu_custom_call.1} parent=1 // pred_fallthru
      _
    // Predicated region
    $region26: #{tpu_custom_call.1} parent=1 // pred_check
      _
    $region27: #{tpu_custom_call.1} parent=1 // pred_check_branch
      %70 = sbr.rel (0) target = $region29
    $region28: #{tpu_custom_call.1} parent=1 // pred_region
      %72 = dma.done [#allocation6], 16384
    $region29: #{tpu_custom_call.1} parent=1 // pred_fallthru
      _
    // Predicated region
    $region30: #{tpu_custom_call.1} parent=1 // pred_check
      _
    $region31: #{tpu_custom_call.1} parent=1 // pred_check_branch
      %74 = sbr.rel (0) target = $region33
    $region32: #{tpu_custom_call.1} parent=1 // pred_region
      %76 = dma.done [#allocation9], 512
    $region33: #{tpu_custom_call.1} parent=1 // pred_fallthru
      _
    %v77 = vld [vmem:[#allocation2] sm:$0xff]
    %v78 = vld [vmem:[#allocation2 + $0x8] sm:$0xff]
    %v79 = vld [vmem:[#allocation7] sm:$0xff]
    %v80 = vld [vmem:[#allocation7 + $0x8] sm:$0xff]
    %v81 = vld [vmem:[#allocation7 + $0x10] sm:$0xff]
    %v82 = vld [vmem:[#allocation7 + $0x18] sm:$0xff]
    %v83 = vld [vmem:[#allocation7 + $0x20] sm:$0xff]
    %v84 = vld [vmem:[#allocation7 + $0x28] sm:$0xff]
    %v85 = vld [vmem:[#allocation7 + $0x30] sm:$0xff]
    %v86 = vld [vmem:[#allocation7 + $0x38] sm:$0xff]
    %v87 = vld [vmem:[#allocation7 + $0x40] sm:$0xff]
    %v88 = vld [vmem:[#allocation7 + $0x48] sm:$0xff]
    %v89 = vld [vmem:[#allocation7 + $0x50] sm:$0xff]
    %v90 = vld [vmem:[#allocation7 + $0x58] sm:$0xff]
    %v91 = vld [vmem:[#allocation7 + $0x60] sm:$0xff]
    %v92 = vld [vmem:[#allocation7 + $0x68] sm:$0xff]
    %v93 = vld [vmem:[#allocation7 + $0x70] sm:$0xff]
    %v94 = vld [vmem:[#allocation7 + $0x78] sm:$0xff]
    %v95 = vld [vmem:[#allocation7 + $0x80] sm:$0xff]
    %v96 = vld [vmem:[#allocation7 + $0x88] sm:$0xff]
    %v97 = vld [vmem:[#allocation7 + $0x90] sm:$0xff]
    %v98 = vld [vmem:[#allocation7 + $0x98] sm:$0xff]
    %v99 = vld [vmem:[#allocation7 + $0xa0] sm:$0xff]
    %v100 = vld [vmem:[#allocation7 + $0xa8] sm:$0xff]
    %v101 = vld [vmem:[#allocation7 + $0xb0] sm:$0xff]
    %v102 = vld [vmem:[#allocation7 + $0xb8] sm:$0xff]
    %v103 = vld [vmem:[#allocation7 + $0xc0] sm:$0xff]
    %v104 = vld [vmem:[#allocation7 + $0xc8] sm:$0xff]
    %v105 = vld [vmem:[#allocation7 + $0xd0] sm:$0xff]
    %v106 = vld [vmem:[#allocation7 + $0xd8] sm:$0xff]
    %v107 = vld [vmem:[#allocation7 + $0xe0] sm:$0xff]
    %v108 = vld [vmem:[#allocation7 + $0xe8] sm:$0xff]
    %v109 = vld [vmem:[#allocation7 + $0xf0] sm:$0xff]
    %v110 = vld [vmem:[#allocation7 + $0xf8] sm:$0xff]
    %v111 = vld [vmem:[#allocation7 + $0x100] sm:$0xff]
    %v112 = vld [vmem:[#allocation7 + $0x108] sm:$0xff]
    %v113 = vld [vmem:[#allocation7 + $0x110] sm:$0xff]
    %v114 = vld [vmem:[#allocation7 + $0x118] sm:$0xff]
    %v115 = vld [vmem:[#allocation7 + $0x120] sm:$0xff]
    %v116 = vld [vmem:[#allocation7 + $0x128] sm:$0xff]
    %v117 = vld [vmem:[#allocation7 + $0x130] sm:$0xff]
    %v118 = vld [vmem:[#allocation7 + $0x138] sm:$0xff]
    %v119 = vld [vmem:[#allocation7 + $0x140] sm:$0xff]
    %v120 = vld [vmem:[#allocation7 + $0x148] sm:$0xff]
    %v121 = vld [vmem:[#allocation7 + $0x150] sm:$0xff]
    %v122 = vld [vmem:[#allocation7 + $0x158] sm:$0xff]
    %v123 = vld [vmem:[#allocation7 + $0x160] sm:$0xff]
    %v124 = vld [vmem:[#allocation7 + $0x168] sm:$0xff]
    %v125 = vld [vmem:[#allocation7 + $0x170] sm:$0xff]
    %v126 = vld [vmem:[#allocation7 + $0x178] sm:$0xff]
    %v127 = vld [vmem:[#allocation7 + $0x180] sm:$0xff]
    %v128 = vld [vmem:[#allocation7 + $0x188] sm:$0xff]
    %v129 = vld [vmem:[#allocation7 + $0x190] sm:$0xff]
    %v130 = vld [vmem:[#allocation7 + $0x198] sm:$0xff]
    %v131 = vld [vmem:[#allocation7 + $0x1a0] sm:$0xff]
    %v132 = vld [vmem:[#allocation7 + $0x1a8] sm:$0xff]
    %v133 = vld [vmem:[#allocation7 + $0x1b0] sm:$0xff]
    %v134 = vld [vmem:[#allocation7 + $0x1b8] sm:$0xff]
    %v135 = vld [vmem:[#allocation7 + $0x1c0] sm:$0xff]
    %v136 = vld [vmem:[#allocation7 + $0x1c8] sm:$0xff]
    %v137 = vld [vmem:[#allocation7 + $0x1d0] sm:$0xff]
    %v138 = vld [vmem:[#allocation7 + $0x1d8] sm:$0xff]
    %v139 = vld [vmem:[#allocation7 + $0x1e0] sm:$0xff]
    %v140 = vld [vmem:[#allocation7 + $0x1e8] sm:$0xff]
    %v141 = vld [vmem:[#allocation7 + $0x1f0] sm:$0xff]
    %v142 = vld [vmem:[#allocation7 + $0x1f8] sm:$0xff]
    %v143 = vld [vmem:[#allocation7 + $0x200] sm:$0xff]
    %v144 = vld [vmem:[#allocation7 + $0x208] sm:$0xff]
    %v145 = vld [vmem:[#allocation7 + $0x210] sm:$0xff]
    %v146 = vld [vmem:[#allocation7 + $0x218] sm:$0xff]
    %v147 = vld [vmem:[#allocation7 + $0x220] sm:$0xff]
    %v148 = vld [vmem:[#allocation7 + $0x228] sm:$0xff]
    %v149 = vld [vmem:[#allocation7 + $0x230] sm:$0xff]
    %v150 = vld [vmem:[#allocation7 + $0x238] sm:$0xff]
    %v151 = vld [vmem:[#allocation7 + $0x240] sm:$0xff]
    %v152 = vld [vmem:[#allocation7 + $0x248] sm:$0xff]
    %v153 = vld [vmem:[#allocation7 + $0x250] sm:$0xff]
    %v154 = vld [vmem:[#allocation7 + $0x258] sm:$0xff]
    %v155 = vld [vmem:[#allocation7 + $0x260] sm:$0xff]
    %v156 = vld [vmem:[#allocation7 + $0x268] sm:$0xff]
    %v157 = vld [vmem:[#allocation7 + $0x270] sm:$0xff]
    %v158 = vld [vmem:[#allocation7 + $0x278] sm:$0xff]
    %v159 = vld [vmem:[#allocation7 + $0x280] sm:$0xff]
    %v160 = vld [vmem:[#allocation7 + $0x288] sm:$0xff]
    %v161 = vld [vmem:[#allocation7 + $0x290] sm:$0xff]
    %v162 = vld [vmem:[#allocation7 + $0x298] sm:$0xff]
    %v163 = vld [vmem:[#allocation7 + $0x2a0] sm:$0xff]
    %v164 = vld [vmem:[#allocation7 + $0x2a8] sm:$0xff]
    %v165 = vld [vmem:[#allocation7 + $0x2b0] sm:$0xff]
    %v166 = vld [vmem:[#allocation7 + $0x2b8] sm:$0xff]
    %v167 = vld [vmem:[#allocation7 + $0x2c0] sm:$0xff]
    %v168 = vld [vmem:[#allocation7 + $0x2c8] sm:$0xff]
    %v169 = vld [vmem:[#allocation7 + $0x2d0] sm:$0xff]
    %v170 = vld [vmem:[#allocation7 + $0x2d8] sm:$0xff]
    %v171 = vld [vmem:[#allocation7 + $0x2e0] sm:$0xff]
    %v172 = vld [vmem:[#allocation7 + $0x2e8] sm:$0xff]
    %v173 = vld [vmem:[#allocation7 + $0x2f0] sm:$0xff]
    %v174 = vld [vmem:[#allocation7 + $0x2f8] sm:$0xff]
    %v175 = vld [vmem:[#allocation7 + $0x300] sm:$0xff]
    %v176 = vld [vmem:[#allocation7 + $0x308] sm:$0xff]
    %v177 = vld [vmem:[#allocation7 + $0x310] sm:$0xff]
    %v178 = vld [vmem:[#allocation7 + $0x318] sm:$0xff]
    %v179 = vld [vmem:[#allocation7 + $0x320] sm:$0xff]
    %v180 = vld [vmem:[#allocation7 + $0x328] sm:$0xff]
    %v181 = vld [vmem:[#allocation7 + $0x330] sm:$0xff]
    %v182 = vld [vmem:[#allocation7 + $0x338] sm:$0xff]
    %v183 = vld [vmem:[#allocation7 + $0x340] sm:$0xff]
    %v184 = vld [vmem:[#allocation7 + $0x348] sm:$0xff]
    %v185 = vld [vmem:[#allocation7 + $0x350] sm:$0xff]
    %v186 = vld [vmem:[#allocation7 + $0x358] sm:$0xff]
    %v187 = vld [vmem:[#allocation7 + $0x360] sm:$0xff]
    %v188 = vld [vmem:[#allocation7 + $0x368] sm:$0xff]
    %v189 = vld [vmem:[#allocation7 + $0x370] sm:$0xff]
    %v190 = vld [vmem:[#allocation7 + $0x378] sm:$0xff]
    %v191 = vld [vmem:[#allocation7 + $0x380] sm:$0xff]
    %v192 = vld [vmem:[#allocation7 + $0x388] sm:$0xff]
    %v193 = vld [vmem:[#allocation7 + $0x390] sm:$0xff]
    %v194 = vld [vmem:[#allocation7 + $0x398] sm:$0xff]
    %v195 = vld [vmem:[#allocation7 + $0x3a0] sm:$0xff]
    %v196 = vld [vmem:[#allocation7 + $0x3a8] sm:$0xff]
    %v197 = vld [vmem:[#allocation7 + $0x3b0] sm:$0xff]
    %v198 = vld [vmem:[#allocation7 + $0x3b8] sm:$0xff]
    %v199 = vld [vmem:[#allocation7 + $0x3c0] sm:$0xff]
    %v200 = vld [vmem:[#allocation7 + $0x3c8] sm:$0xff]
    %v201 = vld [vmem:[#allocation7 + $0x3d0] sm:$0xff]
    %v202 = vld [vmem:[#allocation7 + $0x3d8] sm:$0xff]
    %v203 = vld [vmem:[#allocation7 + $0x3e0] sm:$0xff]
    %v204 = vld [vmem:[#allocation7 + $0x3e8] sm:$0xff]
    %v205 = vld [vmem:[#allocation7 + $0x3f0] sm:$0xff]
    %v206 = vld [vmem:[#allocation7 + $0x3f8] sm:$0xff]
    %209 = vst [vmem:[#allocation1] ss:$4 sm:$0xff] %v77
    %s210 = scalar_lea.vmem [#allocation1], 32
    %211 = vst [vmem:[%s210] ss:$4 sm:$0xff] %v78
    %v212 = vld.sshfl [vmem:[#allocation1] sm:$0xff pattern:$0x73625140]
    %v213 = vld.sshfl [vmem:[#allocation1 + $0x8] sm:$0xff pattern:$0x73625140]
    %v214 = vld.sshfl [vmem:[#allocation1 + $0x10] sm:$0xff pattern:$0x73625140]
    %v215 = vld.sshfl [vmem:[#allocation1 + $0x18] sm:$0xff pattern:$0x73625140]
    %v216 = vld.sshfl [vmem:[#allocation1 + $0x20] sm:$0xff pattern:$0x73625140]
    %v217 = vld.sshfl [vmem:[#allocation1 + $0x28] sm:$0xff pattern:$0x73625140]
    %v218 = vld.sshfl [vmem:[#allocation1 + $0x30] sm:$0xff pattern:$0x73625140]
    %v219 = vld.sshfl [vmem:[#allocation1 + $0x38] sm:$0xff pattern:$0x73625140]
    %228 = vmatpush.msra.mxu0 %v94
    %229 = vmatpush.msra.mxu0 %v93
    %230 = vmatpush.msra.mxu0 %v92
    %231 = vmatpush.msra.mxu0 %v91
    %232 = vmatpush.msra.mxu0 %v90
    %233 = vmatpush.msra.mxu0 %v89
    %234 = vmatpush.msra.mxu0 %v88
    %235 = vmatpush.msra.mxu0 %v87
    %236 = vmatpush.msra.mxu0 %v86
    %237 = vmatpush.msra.mxu0 %v85
    %238 = vmatpush.msra.mxu0 %v84
    %239 = vmatpush.msra.mxu0 %v83
    %240 = vmatpush.msra.mxu0 %v82
    %241 = vmatpush.msra.mxu0 %v81
    %242 = vmatpush.msra.mxu0 %v80
    %243 = vmatpush.msra.mxu0 %v79
    %244 = vmatmul.f32.gmra.mxu0 %v212
    %v245 = vpop.f32.mrf.mxu0
    %v246 = vadd.f32 0.0, %v245
    %247 = vdwg.mxu0
    %248 = vmatpush.msra.mxu0 %v110
    %249 = vmatpush.msra.mxu0 %v109
    %250 = vmatpush.msra.mxu0 %v108
    %251 = vmatpush.msra.mxu0 %v107
    %252 = vmatpush.msra.mxu0 %v106
    %253 = vmatpush.msra.mxu0 %v105
    %254 = vmatpush.msra.mxu0 %v104
    %255 = vmatpush.msra.mxu0 %v103
    %256 = vmatpush.msra.mxu0 %v102
    %257 = vmatpush.msra.mxu0 %v101
    %258 = vmatpush.msra.mxu0 %v100
    %259 = vmatpush.msra.mxu0 %v99
    %260 = vmatpush.msra.mxu0 %v98
    %261 = vmatpush.msra.mxu0 %v97
    %262 = vmatpush.msra.mxu0 %v96
    %263 = vmatpush.msra.mxu0 %v95
    %264 = vmatmul.f32.gmra.mxu0 %v213
    %v265 = vpop.f32.mrf.mxu0
    %v266 = vadd.f32 %v246, %v265
    %267 = vdwg.mxu0
    %268 = vmatpush.msra.mxu0 %v126
    %269 = vmatpush.msra.mxu0 %v125
    %270 = vmatpush.msra.mxu0 %v124
    %271 = vmatpush.msra.mxu0 %v123
    %272 = vmatpush.msra.mxu0 %v122
    %273 = vmatpush.msra.mxu0 %v121
    %274 = vmatpush.msra.mxu0 %v120
    %275 = vmatpush.msra.mxu0 %v119
    %276 = vmatpush.msra.mxu0 %v118
    %277 = vmatpush.msra.mxu0 %v117
    %278 = vmatpush.msra.mxu0 %v116
    %279 = vmatpush.msra.mxu0 %v115
    %280 = vmatpush.msra.mxu0 %v114
    %281 = vmatpush.msra.mxu0 %v113
    %282 = vmatpush.msra.mxu0 %v112
    %283 = vmatpush.msra.mxu0 %v111
    %284 = vmatmul.f32.gmra.mxu0 %v214
    %v285 = vpop.f32.mrf.mxu0
    %v286 = vadd.f32 %v266, %v285
    %287 = vdwg.mxu0
    %288 = vmatpush.msra.mxu0 %v142
    %289 = vmatpush.msra.mxu0 %v141
    %290 = vmatpush.msra.mxu0 %v140
    %291 = vmatpush.msra.mxu0 %v139
    %292 = vmatpush.msra.mxu0 %v138
    %293 = vmatpush.msra.mxu0 %v137
    %294 = vmatpush.msra.mxu0 %v136
    %295 = vmatpush.msra.mxu0 %v135
    %296 = vmatpush.msra.mxu0 %v134
    %297 = vmatpush.msra.mxu0 %v133
    %298 = vmatpush.msra.mxu0 %v132
    %299 = vmatpush.msra.mxu0 %v131
    %300 = vmatpush.msra.mxu0 %v130
    %301 = vmatpush.msra.mxu0 %v129
    %302 = vmatpush.msra.mxu0 %v128
    %303 = vmatpush.msra.mxu0 %v127
    %304 = vmatmul.f32.gmra.mxu0 %v215
    %v305 = vpop.f32.mrf.mxu0
    %v306 = vadd.f32 %v286, %v305
    %307 = vdwg.mxu0
    %308 = vmatpush.msra.mxu0 %v158
    %309 = vmatpush.msra.mxu0 %v157
    %310 = vmatpush.msra.mxu0 %v156
    %311 = vmatpush.msra.mxu0 %v155
    %312 = vmatpush.msra.mxu0 %v154
    %313 = vmatpush.msra.mxu0 %v153
    %314 = vmatpush.msra.mxu0 %v152
    %315 = vmatpush.msra.mxu0 %v151
    %316 = vmatpush.msra.mxu0 %v150
    %317 = vmatpush.msra.mxu0 %v149
    %318 = vmatpush.msra.mxu0 %v148
    %319 = vmatpush.msra.mxu0 %v147
    %320 = vmatpush.msra.mxu0 %v146
    %321 = vmatpush.msra.mxu0 %v145
    %322 = vmatpush.msra.mxu0 %v144
    %323 = vmatpush.msra.mxu0 %v143
    %324 = vmatmul.f32.gmra.mxu0 %v216
    %v325 = vpop.f32.mrf.mxu0
    %v326 = vadd.f32 %v306, %v325
    %327 = vdwg.mxu0
    %328 = vmatpush.msra.mxu0 %v174
    %329 = vmatpush.msra.mxu0 %v173
    %330 = vmatpush.msra.mxu0 %v172
    %331 = vmatpush.msra.mxu0 %v171
    %332 = vmatpush.msra.mxu0 %v170
    %333 = vmatpush.msra.mxu0 %v169
    %334 = vmatpush.msra.mxu0 %v168
    %335 = vmatpush.msra.mxu0 %v167
    %336 = vmatpush.msra.mxu0 %v166
    %337 = vmatpush.msra.mxu0 %v165
    %338 = vmatpush.msra.mxu0 %v164
    %339 = vmatpush.msra.mxu0 %v163
    %340 = vmatpush.msra.mxu0 %v162
    %341 = vmatpush.msra.mxu0 %v161
    %342 = vmatpush.msra.mxu0 %v160
    %343 = vmatpush.msra.mxu0 %v159
    %344 = vmatmul.f32.gmra.mxu0 %v217
    %v345 = vpop.f32.mrf.mxu0
    %v346 = vadd.f32 %v326, %v345
    %347 = vdwg.mxu0
    %348 = vmatpush.msra.mxu0 %v190
    %349 = vmatpush.msra.mxu0 %v189
    %350 = vmatpush.msra.mxu0 %v188
    %351 = vmatpush.msra.mxu0 %v187
    %352 = vmatpush.msra.mxu0 %v186
    %353 = vmatpush.msra.mxu0 %v185
    %354 = vmatpush.msra.mxu0 %v184
    %355 = vmatpush.msra.mxu0 %v183
    %356 = vmatpush.msra.mxu0 %v182
    %357 = vmatpush.msra.mxu0 %v181
    %358 = vmatpush.msra.mxu0 %v180
    %359 = vmatpush.msra.mxu0 %v179
    %360 = vmatpush.msra.mxu0 %v178
    %361 = vmatpush.msra.mxu0 %v177
    %362 = vmatpush.msra.mxu0 %v176
    %363 = vmatpush.msra.mxu0 %v175
    %364 = vmatmul.f32.gmra.mxu0 %v218
    %v365 = vpop.f32.mrf.mxu0
    %v366 = vadd.f32 %v346, %v365
    %367 = vdwg.mxu0
    %368 = vmatpush.msra.mxu0 %v206
    %369 = vmatpush.msra.mxu0 %v205
    %370 = vmatpush.msra.mxu0 %v204
    %371 = vmatpush.msra.mxu0 %v203
    %372 = vmatpush.msra.mxu0 %v202
    %373 = vmatpush.msra.mxu0 %v201
    %374 = vmatpush.msra.mxu0 %v200
    %375 = vmatpush.msra.mxu0 %v199
    %376 = vmatpush.msra.mxu0 %v198
    %377 = vmatpush.msra.mxu0 %v197
    %378 = vmatpush.msra.mxu0 %v196
    %379 = vmatpush.msra.mxu0 %v195
    %380 = vmatpush.msra.mxu0 %v194
    %381 = vmatpush.msra.mxu0 %v193
    %382 = vmatpush.msra.mxu0 %v192
    %383 = vmatpush.msra.mxu0 %v191
    %384 = vmatmul.f32.gmra.mxu0 %v219
    %v385 = vpop.f32.mrf.mxu0
    %v386 = vadd.f32 %v366, %v385
    %387 = vdwg.mxu0
    %v388 = vld [vmem:[#allocation5] sm:$0x3]
    %v389 = vcvt.s32.f32 %v388
    %v390 = vld [vmem:[#allocation8] sm:$0xff]
    %v391 = vld [vmem:[#allocation8 + $0x8] sm:$0xff]
    %v392 = vld [vmem:[#allocation8 + $0x10] sm:$0xff]
    %v393 = vld [vmem:[#allocation8 + $0x18] sm:$0xff]
    %vm394 = vcmask 261120
    %v396 = vsel %vm394, %v389, 0
    %398 = vmatpush.msra.mxu0 0.0
    %399 = vmatpush.msra.mxu0 0.0
    %400 = vmatpush.msra.mxu0 0.0
    %401 = vmatpush.msra.mxu0 0.0
    %402 = vmatpush.msra.mxu0 0.0
    %403 = vmatpush.msra.mxu0 0.0
    %404 = vmatpush.msra.mxu0 0.0
    %405 = vmatpush.msra.mxu0 0.0
    %406 = vmatpush.msra.mxu0 0.0
    %407 = vmatpush.msra.mxu0 0.0
    %408 = vmatpush.msra.mxu0 0.0
    %409 = vmatpush.msra.mxu0 0.0
    %410 = vmatpush.msra.mxu0 %v393
    %411 = vmatpush.msra.mxu0 %v392
    %412 = vmatpush.msra.mxu0 %v391
    %413 = vmatpush.msra.mxu0 %v390
    %414 = vmatmul.f32.gmra.mxu0 %v396
    %v415 = vpop.f32.mrf.mxu0
    %v416 = vadd.f32 0.0, %v415
    %417 = vdwg.mxu0
    %v418 = vrcp.pop %v416
    %v419 = vmul.f32 %v416, %v418
    %v420 = vsub.f32 1.0, %v419
    %v421 = vmul.f32 %v418, %v420
    %v422 = vadd.f32 %v418, %v421
    %vm423 = vweird.f32 %v416
    %vm424 = vweird.f32 %v418
    %vm425 = vmor %vm423, %vm424
    %v426 = vsel %vm425, %v418, %v422
    %v427 = vand.u32 2147483647, %v416
    %vm428 = vcmp.eq.f32.partialorder %v427, 8.507059e+37
    %v429 = vand.u32 %v416, 2147483648
    %v430 = vor.u32 1.1754944e-38, %v429
    %v431 = vsel %vm428, %v430, %v426
    %v432 = vmul.f32 %v386, %v431
    %433 = vst [vmem:[#allocation10] sm:$0x3] %v432
    // Predicated region
    $region34: #{tpu_custom_call.1} parent=1 // pred_check
      _
    $region35: #{tpu_custom_call.1} parent=1 // pred_check_branch
      %435 = sbr.rel (0) target = $region37
    $region36: #{tpu_custom_call.1} parent=1 // pred_region
      %437 = vsyncadd [#allocation4], 0
      %s439 = sshll.u32 [#allocation10], 4
      %s440 = int_to_ptr.vmem [resolvable:$true] %s439
      %s441 = sshll.u32 %s4, 4
      %s442 = int_to_ptr.hbm [resolvable:$true] %s441
      %444 = dma.vmem_to_hbm [thread:$0]  %s440, 32, %s442, [#allocation4]
    $region37: #{tpu_custom_call.1} parent=1 // pred_fallthru
      _
    // Predicated region
    $region38: #{tpu_custom_call.1} parent=1 // pred_check
      _
    $region39: #{tpu_custom_call.1} parent=1 // pred_check_branch
      %446 = sbr.rel (0) target = $region41
    $region40: #{tpu_custom_call.1} parent=1 // pred_region
      %448 = dma.done [#allocation4], 32
    $region41: #{tpu_custom_call.1} parent=1 // pred_fallthru
      _
    %449 = vsyncpa [#allocation3], 1
    %450 = vsyncpa [#allocation6], 1
    %451 = vsyncpa [#allocation9], 1
    %452 = vsyncpa [#allocation4], 1

</llo_original>
